<compile_context>
chip_gen: v7x
topology: tpu7x:2x2x1
jax: 0.10.0
libtpu: 0.0.40
codegen_flags: <defaults>
</compile_context>

<pallas_src>
import functools

import jax
import jax.numpy as jnp
from jax.experimental import pallas as pl
from jax.experimental.pallas import tpu as pltpu

_LANE = 128
_BF16_SUBLANE = 16   # bf16 packs 16 sublanes per vreg
_NEG = -1e30         # bias for padded action lanes -> exp underflows to exactly 0


def _round_up(x: int, m: int) -> int:
    return ((x + m - 1) // m) * m


def _cdiv(a: int, b: int) -> int:
    return (a + b - 1) // b


def _actor_kernel(x_ref, w1_ref, w2_ref, wpi_ref, b_ref, pi_ref, *, h1p, h2p, ap):
    # fc1 + relu  (bf16 MXU inputs, f32 accumulate / elementwise)
    x = x_ref[...].astype(jnp.bfloat16)   # cast in-kernel; state arrives unpadded f32
    h = jnp.dot(x, w1_ref[...], preferred_element_type=jnp.float32)
    h = jnp.maximum(h + b_ref[0:1, :h1p], 0.0)
    # fc2 + relu
    h = jnp.dot(h.astype(jnp.bfloat16), w2_ref[...],
                preferred_element_type=jnp.float32)
    h = jnp.maximum(h + b_ref[1:2, :h2p], 0.0)
    # pi head + softmax over action lanes (padded lanes carry -1e30 bias)
    logits = jnp.dot(h.astype(jnp.bfloat16), wpi_ref[...],
                     preferred_element_type=jnp.float32)
    logits = logits + b_ref[2:3, :ap]
    m = jnp.max(logits, axis=-1, keepdims=True)
    e = jnp.exp(logits - m)
    s = jnp.sum(e, axis=-1, keepdims=True)
    # Exact divide: rows sum to 1 to f32 precision (the approx reciprocal did not).
    pi_ref[...] = (e / s).astype(pi_ref.dtype)


@functools.partial(jax.jit, static_argnames=("n_actions",))
def actor_forward(state, params, n_actions):
    """state: (batch, input_dims) f32; params from prepare_params()."""
    w1p, w2p, wpip, bias_pack = params
    batch, in_dim = state.shape
    h1p, h2p, ap = w1p.shape[1], w2p.shape[1], wpip.shape[1]

    # Batch tile: 16-sublane aligned (bf16 packing).  Large tiles amortize the
    # ~0.35 us fixed cost per grid step; for batch > 32 pick the tile so the
    # grid has >= 2 steps, so the "parallel" batch axis can be sharded across
    # v7x's two TensorCores.  Pallas masks the ragged final block.
    if batch <= 32:
        tb = _round_up(batch, _BF16_SUBLANE)
    else:
        tb = min(1024, _round_up(_cdiv(batch, 2), _BF16_SUBLANE))
    grid = _cdiv(batch, tb)

    # Weights / packed biases: whole-array VMEM residents (single buffer, one
    # DMA, no per-step double-buffering of constant blocks).
    resident = pl.BlockSpec(memory_space=pltpu.MemorySpace.VMEM)

    kernel = functools.partial(_actor_kernel, h1p=h1p, h2p=h2p, ap=ap)
    pi_pad = pl.pallas_call(
        kernel,
        out_shape=jax.ShapeDtypeStruct((batch, ap), jnp.float32),
        grid_spec=pltpu.PrefetchScalarGridSpec(
            num_scalar_prefetch=0,
            grid=(grid,),
            in_specs=[
                pl.BlockSpec((tb, in_dim), lambda i: (i, 0)),  # state: batch-tiled, unpadded f32
                resident,                                      # w1  (in_dim, h1p) bf16
                resident,                                      # w2  (h1p, h2p)   bf16
                resident,                                      # wpi (h2p, ap)    bf16
                resident,                                      # packed biases (3, dmax) f32
            ],
            out_specs=pl.BlockSpec((tb, ap), lambda i: (i, 0)),
        ),
        compiler_params=pltpu.CompilerParams(
            dimension_semantics=("parallel",)),
    )(state, w1p, w2p, wpip, bias_pack)

    return pi_pad[:, :n_actions]


def prepare_params(w1, b1, w2, b2, wpi, bpi):
    """One-time padding/packing of (in, out)-layout params into kernel layout."""
    in_dim, fc1 = w1.shape
    _, fc2 = w2.shape
    _, n_actions = wpi.shape
    h1p = _round_up(fc1, _LANE)
    h2p = _round_up(fc2, _LANE)
    ap = _round_up(n_actions, _LANE)
    dmax = max(h1p, h2p, ap)

    def pad_w(w, rows, cols):
        out = jnp.zeros((rows, cols), jnp.bfloat16)
        return out.at[:w.shape[0], :w.shape[1]].set(w.astype(jnp.bfloat16))

    # w1 keeps its true input_dims rows -> state needs no lane padding at all.
    w1p = pad_w(w1, in_dim, h1p)
    w2p = pad_w(w2, h1p, h2p)
    wpip = pad_w(wpi, h2p, ap)

    bias_pack = jnp.zeros((3, dmax), jnp.float32)
    bias_pack = bias_pack.at[0, :fc1].set(b1.reshape(-1))
    bias_pack = bias_pack.at[1, :fc2].set(b2.reshape(-1))
    bias_pack = bias_pack.at[2, :].set(_NEG)
    bias_pack = bias_pack.at[2, :n_actions].set(bpi.reshape(-1))

    return (w1p, w2p, wpip, bias_pack), n_actions


def init_params(key, input_dims, fc1_dims, fc2_dims, n_actions):
    """Deterministic init mimicking PyTorch nn.Linear (uniform +-1/sqrt(fan_in))."""
    ks = jax.random.split(key, 6)

    def linear(kw, kb, fan_in, fan_out):
        bound = 1.0 / (fan_in ** 0.5)
        w = jax.random.uniform(kw, (fan_in, fan_out), jnp.float32, -bound, bound)
        b = jax.random.uniform(kb, (1, fan_out), jnp.float32, -bound, bound)
        return w, b

    w1, b1 = linear(ks[0], ks[1], input_dims, fc1_dims)
    w2, b2 = linear(ks[2], ks[3], fc1_dims, fc2_dims)
    wpi, bpi = linear(ks[4], ks[5], fc2_dims, n_actions)
    return w1, b1, w2, b2, wpi, bpi


if __name__ == "__main__":
    batch, input_dims, fc1_dims, fc2_dims, n_actions = 2, 32, 64, 64, 4

    key = jax.random.PRNGKey(0)
    k_state, k_params = jax.random.split(key)
    state = jax.random.normal(k_state, (batch, input_dims), jnp.float32)
    raw = init_params(k_params, input_dims, fc1_dims, fc2_dims, n_actions)
    params, n_act = prepare_params(*raw)

    pi = actor_forward(state, params, n_act)
    jax.block_until_ready(pi)

    # Reference in plain JAX with the same bf16 MXU casts as the kernel.
    w1, b1, w2, b2, wpi, bpi = raw
    h = jnp.maximum(jnp.dot(state.astype(jnp.bfloat16), w1.astype(jnp.bfloat16),
                            preferred_element_type=jnp.float32) + b1, 0.0)
    h = jnp.maximum(jnp.dot(h.astype(jnp.bfloat16), w2.astype(jnp.bfloat16),
                            preferred_element_type=jnp.float32) + b2, 0.0)
    logits = jnp.dot(h.astype(jnp.bfloat16), wpi.astype(jnp.bfloat16),
                     preferred_element_type=jnp.float32) + bpi
    ref = jax.nn.softmax(logits, axis=1)

    assert pi.shape == (batch, n_actions)
    assert bool(jnp.all(jnp.isfinite(pi)))
    assert jnp.allclose(jnp.sum(pi, axis=1), 1.0, atol=1e-3)
    assert jnp.allclose(pi, ref, atol=2e-3, rtol=2e-3)

    print("KERNEL_OK")
</pallas_src>

<mosaic_0001>
module attributes {stable_mosaic.version = 11 : i64} {
  func.func @_actor_kernel(%arg0: i32, %arg1: memref<16x32xf32, #tpu.memory_space<vmem>>, %arg2: memref<32x128xbf16, #tpu.memory_space<vmem>>, %arg3: memref<128x128xbf16, #tpu.memory_space<vmem>>, %arg4: memref<128x128xbf16, #tpu.memory_space<vmem>>, %arg5: memref<3x128xf32, #tpu.memory_space<vmem>>, %arg6: memref<16x128xf32, #tpu.memory_space<vmem>>) attributes {dimension_semantics = [#tpu.dimension_semantics<parallel>], iteration_bounds = array<i64: 1>, scalar_prefetch = 0 : i64, scratch_operands = 0 : i64, tpu.core_type = #tpu.core_type<tc>, window_params = [{transform_indices = @transform_0, window_bounds = array<i64: 16, 32>}, {pipeline_mode = #tpu.pipeline_mode<synchronous>, transform_indices = @transform_1, window_bounds = array<i64: 32, 128>}, {pipeline_mode = #tpu.pipeline_mode<synchronous>, transform_indices = @transform_2, window_bounds = array<i64: 128, 128>}, {pipeline_mode = #tpu.pipeline_mode<synchronous>, transform_indices = @transform_3, window_bounds = array<i64: 128, 128>}, {pipeline_mode = #tpu.pipeline_mode<synchronous>, transform_indices = @transform_4, window_bounds = array<i64: 3, 128>}, {transform_indices = @transform_5, window_bounds = array<i64: 16, 128>}]} {
    %c0 = arith.constant 0 : index
    %c0_0 = arith.constant 0 : index
    %0 = vector.load %arg1[%c0, %c0_0] : memref<16x32xf32, #tpu.memory_space<vmem>>, vector<16x32xf32>
    %1 = arith.truncf %0 : vector<16x32xf32> to vector<16x32xbf16>
    %c0_1 = arith.constant 0 : index
    %c0_2 = arith.constant 0 : index
    %2 = vector.load %arg2[%c0_1, %c0_2] : memref<32x128xbf16, #tpu.memory_space<vmem>>, vector<32x128xbf16>
    %cst = arith.constant dense<0.000000e+00> : vector<16x128xf32>
    %3 = tpu.matmul %1, %2, %cst {dimension_numbers = #tpu.dot_dimension_numbers<[1], [0], [0], [1], [0, 0, 1, 1], [], []>} : vector<16x32xbf16>, vector<32x128xbf16>, vector<16x128xf32> -> vector<16x128xf32>
    %c0_3 = arith.constant 0 : index
    %c0_4 = arith.constant 0 : index
    %4 = vector.load %arg5[%c0_3, %c0_4] : memref<3x128xf32, #tpu.memory_space<vmem>>, vector<1x128xf32>
    %5 = vector.broadcast %4 : vector<1x128xf32> to vector<16x128xf32>
    %6 = arith.addf %3, %5 : vector<16x128xf32>
    %cst_5 = arith.constant 0.000000e+00 : f32
    %7 = vector.broadcast %cst_5 : f32 to vector<16x128xf32>
    %8 = arith.maximumf %6, %7 : vector<16x128xf32>
    %9 = arith.truncf %8 : vector<16x128xf32> to vector<16x128xbf16>
    %c0_6 = arith.constant 0 : index
    %c0_7 = arith.constant 0 : index
    %10 = vector.load %arg3[%c0_6, %c0_7] : memref<128x128xbf16, #tpu.memory_space<vmem>>, vector<128x128xbf16>
    %cst_8 = arith.constant dense<0.000000e+00> : vector<16x128xf32>
    %11 = tpu.matmul %9, %10, %cst_8 {dimension_numbers = #tpu.dot_dimension_numbers<[1], [0], [0], [1], [0, 0, 1, 1], [], []>} : vector<16x128xbf16>, vector<128x128xbf16>, vector<16x128xf32> -> vector<16x128xf32>
    %c1 = arith.constant 1 : index
    %c0_9 = arith.constant 0 : index
    %12 = vector.load %arg5[%c1, %c0_9] : memref<3x128xf32, #tpu.memory_space<vmem>>, vector<1x128xf32>
    %13 = vector.broadcast %12 : vector<1x128xf32> to vector<16x128xf32>
    %14 = arith.addf %11, %13 : vector<16x128xf32>
    %cst_10 = arith.constant 0.000000e+00 : f32
    %15 = vector.broadcast %cst_10 : f32 to vector<16x128xf32>
    %16 = arith.maximumf %14, %15 : vector<16x128xf32>
    %17 = arith.truncf %16 : vector<16x128xf32> to vector<16x128xbf16>
    %c0_11 = arith.constant 0 : index
    %c0_12 = arith.constant 0 : index
    %18 = vector.load %arg4[%c0_11, %c0_12] : memref<128x128xbf16, #tpu.memory_space<vmem>>, vector<128x128xbf16>
    %cst_13 = arith.constant dense<0.000000e+00> : vector<16x128xf32>
    %19 = tpu.matmul %17, %18, %cst_13 {dimension_numbers = #tpu.dot_dimension_numbers<[1], [0], [0], [1], [0, 0, 1, 1], [], []>} : vector<16x128xbf16>, vector<128x128xbf16>, vector<16x128xf32> -> vector<16x128xf32>
    %c2 = arith.constant 2 : index
    %c0_14 = arith.constant 0 : index
    %20 = vector.load %arg5[%c2, %c0_14] : memref<3x128xf32, #tpu.memory_space<vmem>>, vector<1x128xf32>
    %21 = vector.broadcast %20 : vector<1x128xf32> to vector<16x128xf32>
    %22 = arith.addf %19, %21 : vector<16x128xf32>
    %cst_15 = arith.constant dense<0xFF800000> : vector<16xf32>
    %23 = vector.multi_reduction <maximumf>, %22, %cst_15 [1] : vector<16x128xf32> to vector<16xf32>
    %24 = vector.shape_cast %23 : vector<16xf32> to vector<16x1xf32>
    %25 = vector.broadcast %24 : vector<16x1xf32> to vector<16x128xf32>
    %26 = arith.subf %22, %25 : vector<16x128xf32>
    %27 = math.exp %26 : vector<16x128xf32>
    %cst_16 = arith.constant dense<0.000000e+00> : vector<16xf32>
    %28 = vector.multi_reduction <add>, %27, %cst_16 [1] : vector<16x128xf32> to vector<16xf32>
    %29 = vector.shape_cast %28 : vector<16xf32> to vector<16x1xf32>
    %30 = vector.broadcast %29 : vector<16x1xf32> to vector<16x128xf32>
    %31 = arith.divf %27, %30 : vector<16x128xf32>
    %c0_17 = arith.constant 0 : index
    %c0_18 = arith.constant 0 : index
    %32 = vector.load %arg6[%c0_17, %c0_18] : memref<16x128xf32, #tpu.memory_space<vmem>>, vector<16x128xf32>
    tpu.vector_store %arg6[%c0_17, %c0_18], %31 {strides = array<i32>} : memref<16x128xf32, #tpu.memory_space<vmem>>, vector<16x128xf32>,
    return
  }
  func.func @transform_0(%arg0: i32) -> (i32, i32) {
    %c0_i32 = arith.constant 0 : i32
    %c0_i32_0 = arith.constant 0 : i32
    return %arg0, %c0_i32 : i32, i32
  }
  func.func @transform_1(%arg0: i32) -> (i32, i32) {
    %c0_i32 = arith.constant 0 : i32
    %c0_i32_0 = arith.constant 0 : i32
    %c0_i32_1 = arith.constant 0 : i32
    return %c0_i32, %c0_i32_0 : i32, i32
  }
  func.func @transform_2(%arg0: i32) -> (i32, i32) {
    %c0_i32 = arith.constant 0 : i32
    %c0_i32_0 = arith.constant 0 : i32
    %c0_i32_1 = arith.constant 0 : i32
    return %c0_i32, %c0_i32_0 : i32, i32
  }
  func.func @transform_3(%arg0: i32) -> (i32, i32) {
    %c0_i32 = arith.constant 0 : i32
    %c0_i32_0 = arith.constant 0 : i32
    %c0_i32_1 = arith.constant 0 : i32
    return %c0_i32, %c0_i32_0 : i32, i32
  }
  func.func @transform_4(%arg0: i32) -> (i32, i32) {
    %c0_i32 = arith.constant 0 : i32
    %c0_i32_0 = arith.constant 0 : i32
    %c0_i32_1 = arith.constant 0 : i32
    return %c0_i32, %c0_i32_0 : i32, i32
  }
  func.func @transform_5(%arg0: i32) -> (i32, i32) {
    %c0_i32 = arith.constant 0 : i32
    %c0_i32_0 = arith.constant 0 : i32
    return %arg0, %c0_i32 : i32, i32
  }
}

</mosaic_0001>

<llo_original>
// kernel: actor_forward.1
$region0: #{actor_forward.1}
  #allocation0 [shape = 'u32[]', space=smem, size = 0x4, offset = 0x4, fixed_abs, tag = 'smem constant byte address 0x4 - core index']
  #allocation1 [shape = 'u32[144,128]{1,0:T(1,128)}', space=vmem, size = 0x12000, scoped, tag = 'internal scratch']
  %s0 = inlined_call_operand.hbm [shape: f32[2,32], index: 0, kind: input, shape index: {}]
  %s1 = inlined_call_operand.hbm [shape: bf16[32,128], index: 1, kind: input, shape index: {}]
  %s2 = inlined_call_operand.hbm [shape: bf16[128,128], index: 2, kind: input, shape index: {}]
  %s3 = inlined_call_operand.hbm [shape: bf16[128,128], index: 3, kind: input, shape index: {}]
  %s4 = inlined_call_operand.vmem [shape: f32[3,128], index: 4, kind: input, shape index: {}]
  %s5 = inlined_call_operand.hbm [shape: f32[2,128], index: 5, kind: output, shape index: {}]
  %s6 = sld [smem:[#allocation0]]
  $region46: #{actor_forward.1} parent=0
    _
  %s8 = ssub.s32 1, %s6
  %s9 = scalar_select 0, %s8, %s6
  $region1: #{actor_forward.1} parent=0
    #allocation2 [shape = 'u8[8192]{0}', space=vmem, size = 0x2000, scoped, tag = 'input window, operand 0, single buffered']
    #allocation3 [shape = 's32[1]{0}', space=sflag, size = 0x4, scoped, tag = 'scoped memory for actor_forward.1']
    #allocation4 [shape = 's32[1]{0}', space=sflag, size = 0x4, scoped, tag = 'scoped memory for actor_forward.1']
    #allocation5 [shape = 'u8[8192]{0}', space=vmem, size = 0x2000, scoped, tag = 'input window, operand 1, single buffered']
    #allocation6 [shape = 's32[1]{0}', space=sflag, size = 0x4, scoped, tag = 'scoped memory for actor_forward.1']
    #allocation7 [shape = 'u8[32768]{0}', space=vmem, size = 0x8000, scoped, tag = 'input window, operand 2, single buffered']
    #allocation8 [shape = 'u8[32768]{0}', space=vmem, size = 0x8000, scoped, tag = 'input window, operand 3, single buffered']
    #allocation9 [shape = 's32[1]{0}', space=sflag, size = 0x4, scoped, tag = 'scoped memory for actor_forward.1']
    #allocation10 [shape = 'u8[8192]{0}', space=vmem, size = 0x2000, scoped, tag = 'output window, operand 0, single buffered']
    %10 = vsyncpa [#allocation3], 0
    %11 = vsyncpa [#allocation6], 0
    %12 = vsyncpa [#allocation9], 0
    %13 = vsyncpa [#allocation4], 0
    // Predicated region
    $region2: #{actor_forward.1} parent=1 // pred_check
      _
    $region3: #{actor_forward.1} parent=1 // pred_check_branch
      %15 = sbr.rel (0) target = $region5
    $region4: #{actor_forward.1} parent=1 // pred_region
      %s17 = ssub.s32 256, 32
      %18 = vsyncadd [#allocation3], %s17
      %s19 = sshll.u32 [#allocation2], 4
      %s20 = int_to_ptr.vmem [resolvable:$true] %s19
      %25 = dma.hbm_to_vmem [thread:$0]  %s0, 32, %s20, [#allocation3], 32, 32, 2
    $region5: #{actor_forward.1} parent=1 // pred_fallthru
      _
    // Predicated region
    $region6: #{actor_forward.1} parent=1 // pred_check
      _
    $region7: #{actor_forward.1} parent=1 // pred_check_branch
      %27 = sbr.rel (0) target = $region9
    $region8: #{actor_forward.1} parent=1 // pred_region
      %s29 = ssub.s32 256, 256
      %30 = vsyncadd [#allocation6], %s29
      %s31 = sshll.u32 [#allocation5], 4
      %s32 = int_to_ptr.vmem [resolvable:$true] %s31
      %37 = dma.hbm_to_vmem [thread:$0]  %s1, 256, %s32, [#allocation6], 64, 64, 4
    $region9: #{actor_forward.1} parent=1 // pred_fallthru
      _
    // Predicated region
    $region10: #{actor_forward.1} parent=1 // pred_check
      _
    $region11: #{actor_forward.1} parent=1 // pred_check_branch
      %39 = sbr.rel (0) target = $region13
    $region12: #{actor_forward.1} parent=1 // pred_region
      %s41 = ssub.s32 1024, 1024
      %42 = vsyncadd [#allocation6], %s41
      %s43 = sshll.u32 [#allocation7], 4
      %s44 = int_to_ptr.vmem [resolvable:$true] %s43
      %49 = dma.hbm_to_vmem [thread:$0]  %s2, 1024, %s44, [#allocation6], 64, 64, 4
    $region13: #{actor_forward.1} parent=1 // pred_fallthru
      _
    // Predicated region
    $region14: #{actor_forward.1} parent=1 // pred_check
      _
    $region15: #{actor_forward.1} parent=1 // pred_check_branch
      %51 = sbr.rel (0) target = $region17
    $region16: #{actor_forward.1} parent=1 // pred_region
      %s53 = ssub.s32 1024, 1024
      %54 = vsyncadd [#allocation9], %s53
      %s55 = sshll.u32 [#allocation8], 4
      %s56 = int_to_ptr.vmem [resolvable:$true] %s55
      %61 = dma.hbm_to_vmem [thread:$0]  %s3, 1024, %s56, [#allocation9], 64, 64, 4
    $region17: #{actor_forward.1} parent=1 // pred_fallthru
      _
    // Predicated region
    $region18: #{actor_forward.1} parent=1 // pred_check
      _
    $region19: #{actor_forward.1} parent=1 // pred_check_branch
      %63 = sbr.rel (0) target = $region21
    $region20: #{actor_forward.1} parent=1 // pred_region
      _
    $region21: #{actor_forward.1} parent=1 // pred_fallthru
      _
    // Predicated region
    $region22: #{actor_forward.1} parent=1 // pred_check
      _
    $region23: #{actor_forward.1} parent=1 // pred_check_branch
      %65 = sbr.rel (0) target = $region25
    $region24: #{actor_forward.1} parent=1 // pred_region
      %66 = dma.done [#allocation3], 256
    $region25: #{actor_forward.1} parent=1 // pred_fallthru
      _
    // Predicated region
    $region26: #{actor_forward.1} parent=1 // pred_check
      _
    $region27: #{actor_forward.1} parent=1 // pred_check_branch
      %68 = sbr.rel (0) target = $region29
    $region28: #{actor_forward.1} parent=1 // pred_region
      %69 = dma.done [#allocation6], 256
    $region29: #{actor_forward.1} parent=1 // pred_fallthru
      _
    // Predicated region
    $region30: #{actor_forward.1} parent=1 // pred_check
      _
    $region31: #{actor_forward.1} parent=1 // pred_check_branch
      %71 = sbr.rel (0) target = $region33
    $region32: #{actor_forward.1} parent=1 // pred_region
      %72 = dma.done [#allocation6], 1024
    $region33: #{actor_forward.1} parent=1 // pred_fallthru
      _
    // Predicated region
    $region34: #{actor_forward.1} parent=1 // pred_check
      _
    $region35: #{actor_forward.1} parent=1 // pred_check_branch
      %74 = sbr.rel (0) target = $region37
    $region36: #{actor_forward.1} parent=1 // pred_region
      %75 = dma.done [#allocation9], 1024
    $region37: #{actor_forward.1} parent=1 // pred_fallthru
      _
    %v77 = vld [vmem:[#allocation2] sm:$0xff]
    %v78 = vld [vmem:[#allocation2 + $0x8] sm:$0xff]
    %v79 = vpack.c.bf16 %v78, %v77
    %v80 = vld [vmem:[#allocation5] sm:$0xf]
    %v81 = vld [vmem:[#allocation5 + $0x4] sm:$0xf]
    %v82 = vld [vmem:[#allocation5 + $0x8] sm:$0xf]
    %v83 = vld [vmem:[#allocation5 + $0xc] sm:$0xf]
    %v84 = vld [vmem:[%s4] sm:$0x1]
    %v85 = vlaneseq
    %v86 = vshrl.u32 %v85, 7
    %v87 = vsub.s32 0, %v86
    %v88 = vrot.slane %v84, %v87
    %v93 = vunpack.c.l.b16 %v80
    %v94 = vunpack.c.l.b16 %v81
    %v95 = vunpack.c.l.b16 %v82
    %v96 = vunpack.c.l.b16 %v83
    %v97 = vpack.c.b16 %v94, %v93
    %v98 = vpack.c.b16 %v96, %v95
    %vm101 = vcmask 261120
    %v103 = vsel %vm101, %v79, 0
    %105 = vmatprep.subr.bf16.mxu0 0
    %106 = vmatpush1.bf16.msra.mxu0 %v97
    %107 = vmatprep.subr.bf16.mxu0 0
    %108 = vmatpush1.bf16.msra.mxu0 %v98
    %109 = vmatprep.subr.bf16.mxu0 0
    %110 = vmatpush1.bf16.msra.mxu0 0
    %111 = vmatprep.subr.bf16.mxu0 0
    %112 = vmatpush1.bf16.msra.mxu0 0
    %113 = vmatprep.subr.bf16.mxu0 0
    %114 = vmatpush1.bf16.msra.mxu0 0
    %115 = vmatprep.subr.bf16.mxu0 0
    %116 = vmatpush1.bf16.msra.mxu0 0
    %117 = vmatprep.subr.bf16.mxu0 0
    %118 = vmatpush1.bf16.msra.mxu0 0
    %119 = vmatprep.subr.bf16.mxu0 0
    %120 = vmatpush1.bf16.msra.mxu0 0
    %121 = vmatprep.subr.bf16.mxu0 0
    %122 = vmatpush1.bf16.msra.mxu0 0
    %123 = vmatprep.subr.bf16.mxu0 0
    %124 = vmatpush1.bf16.msra.mxu0 0
    %125 = vmatprep.subr.bf16.mxu0 0
    %126 = vmatpush1.bf16.msra.mxu0 0
    %127 = vmatprep.subr.bf16.mxu0 0
    %128 = vmatpush1.bf16.msra.mxu0 0
    %129 = vmatprep.subr.bf16.mxu0 0
    %130 = vmatpush1.bf16.msra.mxu0 0
    %131 = vmatprep.subr.bf16.mxu0 0
    %132 = vmatpush1.bf16.msra.mxu0 0
    %133 = vmatprep.subr.bf16.mxu0 0
    %134 = vmatpush1.bf16.msra.mxu0 0
    %135 = vmatprep.subr.bf16.mxu0 0
    %136 = vmatpush1.bf16.msra.mxu0 0
    %137 = vmatprep.mubr.bf16.mxu0 0
    %138 = vmatmul.mubr.bf16.gmra.mrb[0].mxu0 %v103
    %v139 = vpop.f32.mrb[0].mxu0
    %v140 = vadd.f32 %v88, %v139
    %v141 = vpop.f32.mrb[0].mxu0
    %v142 = vpop.f32.mrb[0].mxu0
    %v143 = vadd.f32 %v88, %v142
    %v144 = vpop.f32.mrb[0].mxu0
    %145 = vdwg.mxu0
    %v146 = vmax.f32 %v140, 0.0
    %v147 = vmax.f32 %v143, 0.0
    %v148 = vpack.c.bf16 %v147, %v146
    %v149 = vld [vmem:[#allocation7] sm:$0xf]
    %v150 = vld [vmem:[#allocation7 + $0x4] sm:$0xf]
    %v151 = vld [vmem:[#allocation7 + $0x8] sm:$0xf]
    %v152 = vld [vmem:[#allocation7 + $0xc] sm:$0xf]
    %v153 = vld [vmem:[#allocation7 + $0x10] sm:$0xf]
    %v154 = vld [vmem:[#allocation7 + $0x14] sm:$0xf]
    %v155 = vld [vmem:[#allocation7 + $0x18] sm:$0xf]
    %v156 = vld [vmem:[#allocation7 + $0x1c] sm:$0xf]
    %v157 = vld [vmem:[#allocation7 + $0x20] sm:$0xf]
    %v158 = vld [vmem:[#allocation7 + $0x24] sm:$0xf]
    %v159 = vld [vmem:[#allocation7 + $0x28] sm:$0xf]
    %v160 = vld [vmem:[#allocation7 + $0x2c] sm:$0xf]
    %v161 = vld [vmem:[#allocation7 + $0x30] sm:$0xf]
    %v162 = vld [vmem:[#allocation7 + $0x34] sm:$0xf]
    %v163 = vld [vmem:[#allocation7 + $0x38] sm:$0xf]
    %v164 = vld [vmem:[#allocation7 + $0x3c] sm:$0xf]
    %v165 = vld [vmem:[%s4 + $0x1] sm:$0x1]
    %v166 = vlaneseq
    %v167 = vshrl.u32 %v166, 7
    %v168 = vsub.s32 0, %v167
    %v169 = vrot.slane %v165, %v168
    %v186 = vunpack.c.l.b16 %v149
    %v187 = vunpack.c.l.b16 %v150
    %v188 = vunpack.c.l.b16 %v151
    %v189 = vunpack.c.l.b16 %v152
    %v190 = vunpack.c.l.b16 %v153
    %v191 = vunpack.c.l.b16 %v154
    %v192 = vunpack.c.l.b16 %v155
    %v193 = vunpack.c.l.b16 %v156
    %v194 = vunpack.c.l.b16 %v157
    %v195 = vunpack.c.l.b16 %v158
    %v196 = vunpack.c.l.b16 %v159
    %v197 = vunpack.c.l.b16 %v160
    %v198 = vunpack.c.l.b16 %v161
    %v199 = vunpack.c.l.b16 %v162
    %v200 = vunpack.c.l.b16 %v163
    %v201 = vunpack.c.l.b16 %v164
    %v202 = vpack.c.b16 %v187, %v186
    %v203 = vpack.c.b16 %v189, %v188
    %v204 = vpack.c.b16 %v191, %v190
    %v205 = vpack.c.b16 %v193, %v192
    %v206 = vpack.c.b16 %v195, %v194
    %v207 = vpack.c.b16 %v197, %v196
    %v208 = vpack.c.b16 %v199, %v198
    %v209 = vpack.c.b16 %v201, %v200
    %218 = vmatprep.subr.bf16.mxu0 0
    %219 = vmatpush1.bf16.msra.mxu0 %v202
    %220 = vmatprep.subr.bf16.mxu0 0
    %221 = vmatpush1.bf16.msra.mxu0 %v203
    %222 = vmatprep.subr.bf16.mxu0 0
    %223 = vmatpush1.bf16.msra.mxu0 %v204
    %224 = vmatprep.subr.bf16.mxu0 0
    %225 = vmatpush1.bf16.msra.mxu0 %v205
    %226 = vmatprep.subr.bf16.mxu0 0
    %227 = vmatpush1.bf16.msra.mxu0 %v206
    %228 = vmatprep.subr.bf16.mxu0 0
    %229 = vmatpush1.bf16.msra.mxu0 %v207
    %230 = vmatprep.subr.bf16.mxu0 0
    %231 = vmatpush1.bf16.msra.mxu0 %v208
    %232 = vmatprep.subr.bf16.mxu0 0
    %233 = vmatpush1.bf16.msra.mxu0 %v209
    %234 = vmatprep.subr.bf16.mxu0 0
    %235 = vmatpush1.bf16.msra.mxu0 0
    %236 = vmatprep.subr.bf16.mxu0 0
    %237 = vmatpush1.bf16.msra.mxu0 0
    %238 = vmatprep.subr.bf16.mxu0 0
    %239 = vmatpush1.bf16.msra.mxu0 0
    %240 = vmatprep.subr.bf16.mxu0 0
    %241 = vmatpush1.bf16.msra.mxu0 0
    %242 = vmatprep.subr.bf16.mxu0 0
    %243 = vmatpush1.bf16.msra.mxu0 0
    %244 = vmatprep.subr.bf16.mxu0 0
    %245 = vmatpush1.bf16.msra.mxu0 0
    %246 = vmatprep.subr.bf16.mxu0 0
    %247 = vmatpush1.bf16.msra.mxu0 0
    %248 = vmatprep.subr.bf16.mxu0 0
    %249 = vmatpush1.bf16.msra.mxu0 0
    %250 = vmatprep.mubr.bf16.mxu0 0
    %251 = vmatmul.mubr.bf16.gmra.mrb[0].mxu0 %v148
    %v252 = vpop.f32.mrb[0].mxu0
    %v253 = vadd.f32 %v169, %v252
    %v254 = vpop.f32.mrb[0].mxu0
    %v255 = vpop.f32.mrb[0].mxu0
    %v256 = vadd.f32 %v169, %v255
    %v257 = vpop.f32.mrb[0].mxu0
    %258 = vdwg.mxu0
    %v259 = vmax.f32 %v253, 0.0
    %v260 = vmax.f32 %v256, 0.0
    %v261 = vpack.c.bf16 %v260, %v259
    %v262 = vld [vmem:[#allocation8] sm:$0xf]
    %v263 = vld [vmem:[#allocation8 + $0x4] sm:$0xf]
    %v264 = vld [vmem:[#allocation8 + $0x8] sm:$0xf]
    %v265 = vld [vmem:[#allocation8 + $0xc] sm:$0xf]
    %v266 = vld [vmem:[#allocation8 + $0x10] sm:$0xf]
    %v267 = vld [vmem:[#allocation8 + $0x14] sm:$0xf]
    %v268 = vld [vmem:[#allocation8 + $0x18] sm:$0xf]
    %v269 = vld [vmem:[#allocation8 + $0x1c] sm:$0xf]
    %v270 = vld [vmem:[#allocation8 + $0x20] sm:$0xf]
    %v271 = vld [vmem:[#allocation8 + $0x24] sm:$0xf]
    %v272 = vld [vmem:[#allocation8 + $0x28] sm:$0xf]
    %v273 = vld [vmem:[#allocation8 + $0x2c] sm:$0xf]
    %v274 = vld [vmem:[#allocation8 + $0x30] sm:$0xf]
    %v275 = vld [vmem:[#allocation8 + $0x34] sm:$0xf]
    %v276 = vld [vmem:[#allocation8 + $0x38] sm:$0xf]
    %v277 = vld [vmem:[#allocation8 + $0x3c] sm:$0xf]
    %v278 = vld [vmem:[%s4 + $0x2] sm:$0x1]
    %v279 = vlaneseq
    %v280 = vshrl.u32 %v279, 7
    %v281 = vsub.s32 0, %v280
    %v282 = vrot.slane %v278, %v281
    %v299 = vunpack.c.l.b16 %v262
    %v300 = vunpack.c.l.b16 %v263
    %v301 = vunpack.c.l.b16 %v264
    %v302 = vunpack.c.l.b16 %v265
    %v303 = vunpack.c.l.b16 %v266
    %v304 = vunpack.c.l.b16 %v267
    %v305 = vunpack.c.l.b16 %v268
    %v306 = vunpack.c.l.b16 %v269
    %v307 = vunpack.c.l.b16 %v270
    %v308 = vunpack.c.l.b16 %v271
    %v309 = vunpack.c.l.b16 %v272
    %v310 = vunpack.c.l.b16 %v273
    %v311 = vunpack.c.l.b16 %v274
    %v312 = vunpack.c.l.b16 %v275
    %v313 = vunpack.c.l.b16 %v276
    %v314 = vunpack.c.l.b16 %v277
    %v315 = vpack.c.b16 %v300, %v299
    %v316 = vpack.c.b16 %v302, %v301
    %v317 = vpack.c.b16 %v304, %v303
    %v318 = vpack.c.b16 %v306, %v305
    %v319 = vpack.c.b16 %v308, %v307
    %v320 = vpack.c.b16 %v310, %v309
    %v321 = vpack.c.b16 %v312, %v311
    %v322 = vpack.c.b16 %v314, %v313
    %331 = vmatprep.subr.bf16.mxu0 0
    %332 = vmatpush1.bf16.msra.mxu0 %v315
    %333 = vmatprep.subr.bf16.mxu0 0
    %334 = vmatpush1.bf16.msra.mxu0 %v316
    %335 = vmatprep.subr.bf16.mxu0 0
    %336 = vmatpush1.bf16.msra.mxu0 %v317
    %337 = vmatprep.subr.bf16.mxu0 0
    %338 = vmatpush1.bf16.msra.mxu0 %v318
    %339 = vmatprep.subr.bf16.mxu0 0
    %340 = vmatpush1.bf16.msra.mxu0 %v319
    %341 = vmatprep.subr.bf16.mxu0 0
    %342 = vmatpush1.bf16.msra.mxu0 %v320
    %343 = vmatprep.subr.bf16.mxu0 0
    %344 = vmatpush1.bf16.msra.mxu0 %v321
    %345 = vmatprep.subr.bf16.mxu0 0
    %346 = vmatpush1.bf16.msra.mxu0 %v322
    %347 = vmatprep.subr.bf16.mxu0 0
    %348 = vmatpush1.bf16.msra.mxu0 0
    %349 = vmatprep.subr.bf16.mxu0 0
    %350 = vmatpush1.bf16.msra.mxu0 0
    %351 = vmatprep.subr.bf16.mxu0 0
    %352 = vmatpush1.bf16.msra.mxu0 0
    %353 = vmatprep.subr.bf16.mxu0 0
    %354 = vmatpush1.bf16.msra.mxu0 0
    %355 = vmatprep.subr.bf16.mxu0 0
    %356 = vmatpush1.bf16.msra.mxu0 0
    %357 = vmatprep.subr.bf16.mxu0 0
    %358 = vmatpush1.bf16.msra.mxu0 0
    %359 = vmatprep.subr.bf16.mxu0 0
    %360 = vmatpush1.bf16.msra.mxu0 0
    %361 = vmatprep.subr.bf16.mxu0 0
    %362 = vmatpush1.bf16.msra.mxu0 0
    %363 = vmatprep.mubr.bf16.mxu0 0
    %364 = vmatmul.mubr.bf16.gmra.mrb[0].mxu0 %v261
    %v365 = vpop.f32.mrb[0].mxu0
    %v366 = vadd.f32 %v282, %v365
    %v367 = vpop.f32.mrb[0].mxu0
    %v368 = vpop.f32.mrb[0].mxu0
    %v369 = vadd.f32 %v282, %v368
    %v370 = vpop.f32.mrb[0].mxu0
    %371 = vdwg.mxu0
    %372 = vmax.xlane.f32.xlu0 %v366
    %v373 = vpop.xlane.xlu0 %372
    %374 = vmax.xlane.f32.xlu0 %v369
    %v375 = vpop.xlane.xlu0 %374
    %v376 = vsub.f32 %v366, %v373
    %v377 = vsub.f32 %v369, %v375
    %v378 = vmul.f32 %v376, 1.442695
    %v379 = vpow.pop %v378
    %v380 = vmul.f32 %v377, 1.442695
    %v381 = vpow.pop %v380
    %382 = vadd.xlane.f32.xlu0 %v379
    %v383 = vpop.xlane.xlu0 %382
    %384 = vadd.xlane.f32.xlu0 %v381
    %v385 = vpop.xlane.xlu0 %384
    %v386 = vrcp.pop %v383
    %v387 = vmul.f32 %v379, %v386
    %v388 = vrcp.pop %v385
    %v389 = vmul.f32 %v381, %v388
    %390 = vst [vmem:[#allocation10] sm:$0xff] %v387
    %391 = vst [vmem:[#allocation10 + $0x8] sm:$0xff] %v389
    // Predicated region
    $region38: #{actor_forward.1} parent=1 // pred_check
      _
    $region39: #{actor_forward.1} parent=1 // pred_check_branch
      %393 = sbr.rel (0) target = $region41
    $region40: #{actor_forward.1} parent=1 // pred_region
      %s395 = ssub.s32 256, 32
      %396 = vsyncadd [#allocation4], %s395
      %s397 = sshll.u32 [#allocation10], 4
      %s398 = int_to_ptr.vmem [resolvable:$true] %s397
      %403 = dma.vmem_to_hbm [thread:$0]  %s398, 32, %s5, [#allocation4], 32, 32, 2
    $region41: #{actor_forward.1} parent=1 // pred_fallthru
      _
    // Predicated region
    $region42: #{actor_forward.1} parent=1 // pred_check
      _
    $region43: #{actor_forward.1} parent=1 // pred_check_branch
      %405 = sbr.rel (0) target = $region45
    $region44: #{actor_forward.1} parent=1 // pred_region
      %406 = dma.done [#allocation4], 256
    $region45: #{actor_forward.1} parent=1 // pred_fallthru
      _
    %407 = vsyncpa [#allocation3], 1
    %408 = vsyncpa [#allocation6], 1
    %409 = vsyncpa [#allocation9], 1
    %410 = vsyncpa [#allocation4], 1

</llo_original>
